<compile_context>
chip_gen: v7x
topology: tpu7x:2x2x1
jax: 0.10.0
libtpu: 0.0.40
codegen_flags: <defaults>
</compile_context>

<pallas_src>
import functools

import jax
import jax.numpy as jnp
from jax.experimental import pallas as pl
from jax.experimental.pallas import tpu as pltpu


def _feature_gate_kernel(x_ref, wt_ref, o_ref, *, inv_s):
    """x_ref:  (N, C, ts) f32 native-layout activation tile
       wt_ref: (C, C)     f32 pre-transposed weight (W.T), resident
       o_ref:  (N, C)     f32 per-core partial output (resident accumulator)"""
    s = pl.program_id(1)

    @pl.when(s == 0)
    def _():
        o_ref[...] = jnp.zeros_like(o_ref)

    # f32 spatial partial-sum of this tile: (N, C, ts) -> (N, C)
    o_ref[...] += jnp.sum(x_ref[...], axis=-1)

    @pl.when(s == pl.num_programs(1) - 1)
    def _():
        # mean (scaled by the *global* 1/S; halves are summed in the wrapper),
        # then the tiny gating matmul, f32 accumulate, in place on o_ref.
        pooled = o_ref[...] * inv_s
        o_ref[...] = jnp.dot(pooled, wt_ref[...],
                             preferred_element_type=jnp.float32)


def _pick_spatial_tile(S, N, C, bytes_budget):
    """Largest lane-aligned (multiple of 128) divisor of S whose f32 block
    (N, C, ts) fits `bytes_budget`; falls back to the smallest aligned divisor,
    or to S itself when S has no multiple-of-128 divisor (single full step)."""
    cands = [t for t in range(128, S + 1, 128) if S % t == 0]
    if not cands:
        return S
    row_bytes = N * C * 4
    fitting = [t for t in cands if t * row_bytes <= bytes_budget]
    return max(fitting) if fitting else min(cands)


def feature_gate(x_ncdhw, weight, *, block_bytes=8 << 20):
    """FeatureGate forward.  x: (N, C, D, H, W) f32, weight: (1,1,1,C,C) f32.
    Returns (N, C) f32 = mean(x, dims=(2,3,4)) @ W.T ."""
    N, C, D, H, W = x_ncdhw.shape
    S = D * H * W
    assert weight.shape[-2:] == (C, C)

    # Free contiguous collapse of the native NCDHW layout -> (N, C, S).
    # No transpose, no cast, no pad: the kernel streams f32 straight from HBM.
    x = x_ncdhw.reshape(N, C, S)
    wt = jnp.transpose(weight.reshape(C, C))          # W.T (C x C, tiny)

    ts = _pick_spatial_tile(S, N, C, block_bytes)
    n_tiles = S // ts

    # Split the spatial reduction into two halves on a leading 'parallel' axis
    # so v7x's two TensorCores both stream HBM (plain serial loop on v5e/v6e).
    num_cores = 2 if (n_tiles % 2 == 0 and n_tiles >= 2) else 1
    steps = n_tiles // num_cores

    act_bytes = N * C * ts * 4
    w_bytes = C * C * 4
    out_bytes = N * C * 4
    # double-buffered activation block + (double-buffered) resident weight +
    # output block + headroom; sized so the bigger tiles compile on all gens.
    vmem_limit = int(2 * act_bytes + 2 * w_bytes + 2 * out_bytes + (4 << 20))

    cost = pl.CostEstimate(
        flops=N * C * S + 2 * N * C * C * num_cores,
        transcendentals=0,
        bytes_accessed=N * C * S * 4 + w_bytes + num_cores * out_bytes)

    kernel = functools.partial(_feature_gate_kernel, inv_s=1.0 / S)

    partials = pl.pallas_call(
        kernel,
        out_shape=jax.ShapeDtypeStruct((num_cores, N, C), jnp.float32),
        grid=(num_cores, steps),
        in_specs=[
            # activation tiles: each core p walks its own half of the S axis
            pl.BlockSpec((N, C, ts), lambda p, s: (0, 0, p * steps + s)),
            # weight: constant block index -> fetched once, stays resident
            pl.BlockSpec((C, C), lambda p, s: (0, 0)),
        ],
        # per-core partial output; leading dim squeezed out of the kernel view
        out_specs=pl.BlockSpec((None, N, C), lambda p, s: (p, 0, 0)),
        compiler_params=pltpu.CompilerParams(
            dimension_semantics=("parallel", "arbitrary"),
            vmem_limit_bytes=vmem_limit),
        cost_estimate=cost,
    )(x, wt)

    # tiny combine of the per-core partial results (matmul is linear in pooled)
    return partials[0] if num_cores == 1 else partials[0] + partials[1]


# ------------------------- pure-JAX reference check -------------------------

def ref_forward(x_ncdhw, weight):
    C = x_ncdhw.shape[1]
    pooled = jnp.mean(x_ncdhw, axis=(2, 3, 4))       # global AvgPool3d -> (N, C)
    return pooled @ weight.reshape(C, C).T           # torch.mm(x, weight.t())


# ----------------------------------- main ------------------------------------

if __name__ == "__main__":
    key = jax.random.PRNGKey(0)
    wkey, xkey = jax.random.split(key)

    N, C, D, H, W = 2, 128, 8, 16, 16
    weight = 0.05 * jax.random.normal(wkey, (1, 1, 1, C, C), jnp.float32)
    x = jax.random.normal(xkey, (N, C, D, H, W), jnp.float32)

    # small block budget so the tiny test shape still exercises the multi-tile
    # reduction and the dual-core split (default budget targets ~8 MiB blocks)
    out = jax.block_until_ready(feature_gate(x, weight, block_bytes=512 * 1024))
    assert out.shape == (N, C), out.shape

    ref = jax.block_until_ready(ref_forward(x, weight))
    err = float(jnp.max(jnp.abs(out - ref)))
    if err > 1e-2:
        raise AssertionError(f"Pallas result mismatch vs reference, max|err|={err}")

    print("KERNEL_OK")
</pallas_src>

<mosaic_0001>
module attributes {stable_mosaic.version = 11 : i64} {
  func.func @_feature_gate_kernel(%arg0: i32, %arg1: i32, %arg2: memref<2x128x512xf32, #tpu.memory_space<vmem>>, %arg3: memref<128x128xf32, #tpu.memory_space<vmem>>, %arg4: memref<1x2x128xf32, #tpu.memory_space<vmem>>) attributes {dimension_semantics = [#tpu.dimension_semantics<parallel>, #tpu.dimension_semantics<arbitrary>], iteration_bounds = array<i64: 2, 2>, scalar_prefetch = 0 : i64, scratch_operands = 0 : i64, tpu.core_type = #tpu.core_type<tc>, window_params = [{transform_indices = @transform_0, window_bounds = array<i64: 2, 128, 512>}, {pipeline_mode = #tpu.pipeline_mode<synchronous>, transform_indices = @transform_1, window_bounds = array<i64: 128, 128>}, {transform_indices = @transform_2, window_bounds = array<i64: 1, 2, 128>}]} {
    %c0_i32 = arith.constant 0 : i32
    %0 = arith.cmpi eq, %arg1, %c0_i32 : i32
    %1 = arith.extui %0 : i1 to i32
    %c0_i32_0 = arith.constant 0 : i32
    %2 = arith.cmpi ne, %1, %c0_i32_0 : i32
    scf.if %2 {
      %cst_10 = arith.constant 0.000000e+00 : f32
      %14 = vector.broadcast %cst_10 : f32 to vector<2x128xf32>
      %c0_11 = arith.constant 0 : index
      %c0_12 = arith.constant 0 : index
      %c0_13 = arith.constant 0 : index
      %15 = vector.load %arg4[%c0_11, %c0_12, %c0_13] : memref<1x2x128xf32, #tpu.memory_space<vmem>>, vector<1x2x128xf32>
      %16 = vector.shape_cast %15 : vector<1x2x128xf32> to vector<2x128xf32>
      %17 = vector.shape_cast %14 : vector<2x128xf32> to vector<1x2x128xf32>
      tpu.vector_store %arg4[%c0_11, %c0_12, %c0_13], %17 {strides = array<i32>} : memref<1x2x128xf32, #tpu.memory_space<vmem>>, vector<1x2x128xf32>,
    } else {
    }
    %c0 = arith.constant 0 : index
    %c0_1 = arith.constant 0 : index
    %c0_2 = arith.constant 0 : index
    %3 = vector.load %arg4[%c0, %c0_1, %c0_2] : memref<1x2x128xf32, #tpu.memory_space<vmem>>, vector<1x2x128xf32>
    %4 = vector.shape_cast %3 : vector<1x2x128xf32> to vector<2x128xf32>
    %c0_3 = arith.constant 0 : index
    %c0_4 = arith.constant 0 : index
    %c0_5 = arith.constant 0 : index
    %5 = vector.load %arg2[%c0_3, %c0_4, %c0_5] : memref<2x128x512xf32, #tpu.memory_space<vmem>>, vector<2x128x512xf32>
    %cst = arith.constant dense<0.000000e+00> : vector<2x128xf32>
    %6 = vector.multi_reduction <add>, %5, %cst [2] : vector<2x128x512xf32> to vector<2x128xf32>
    %7 = arith.addf %4, %6 : vector<2x128xf32>
    %c0_6 = arith.constant 0 : index
    %c0_7 = arith.constant 0 : index
    %c0_8 = arith.constant 0 : index
    %8 = vector.load %arg4[%c0_6, %c0_7, %c0_8] : memref<1x2x128xf32, #tpu.memory_space<vmem>>, vector<1x2x128xf32>
    %9 = vector.shape_cast %8 : vector<1x2x128xf32> to vector<2x128xf32>
    %10 = vector.shape_cast %7 : vector<2x128xf32> to vector<1x2x128xf32>
    tpu.vector_store %arg4[%c0_6, %c0_7, %c0_8], %10 {strides = array<i32>} : memref<1x2x128xf32, #tpu.memory_space<vmem>>, vector<1x2x128xf32>,
    %c1_i32 = arith.constant 1 : i32
    %11 = arith.cmpi eq, %arg1, %c1_i32 : i32
    %12 = arith.extui %11 : i1 to i32
    %c0_i32_9 = arith.constant 0 : i32
    %13 = arith.cmpi ne, %12, %c0_i32_9 : i32
    scf.if %13 {
      %c0_10 = arith.constant 0 : index
      %c0_11 = arith.constant 0 : index
      %c0_12 = arith.constant 0 : index
      %14 = vector.load %arg4[%c0_10, %c0_11, %c0_12] : memref<1x2x128xf32, #tpu.memory_space<vmem>>, vector<1x2x128xf32>
      %15 = vector.shape_cast %14 : vector<1x2x128xf32> to vector<2x128xf32>
      %cst_13 = arith.constant 4.8828125E-4 : f32
      %16 = vector.broadcast %cst_13 : f32 to vector<2x128xf32>
      %17 = arith.mulf %15, %16 : vector<2x128xf32>
      %c0_14 = arith.constant 0 : index
      %c0_15 = arith.constant 0 : index
      %18 = vector.load %arg3[%c0_14, %c0_15] : memref<128x128xf32, #tpu.memory_space<vmem>>, vector<128x128xf32>
      %cst_16 = arith.constant dense<0.000000e+00> : vector<2x128xf32>
      %19 = tpu.matmul %17, %18, %cst_16 {dimension_numbers = #tpu.dot_dimension_numbers<[1], [0], [0], [1], [0, 0, 1, 1], [], []>} : vector<2x128xf32>, vector<128x128xf32>, vector<2x128xf32> -> vector<2x128xf32>
      %c0_17 = arith.constant 0 : index
      %c0_18 = arith.constant 0 : index
      %c0_19 = arith.constant 0 : index
      %20 = vector.load %arg4[%c0_17, %c0_18, %c0_19] : memref<1x2x128xf32, #tpu.memory_space<vmem>>, vector<1x2x128xf32>
      %21 = vector.shape_cast %20 : vector<1x2x128xf32> to vector<2x128xf32>
      %22 = vector.shape_cast %19 : vector<2x128xf32> to vector<1x2x128xf32>
      tpu.vector_store %arg4[%c0_17, %c0_18, %c0_19], %22 {strides = array<i32>} : memref<1x2x128xf32, #tpu.memory_space<vmem>>, vector<1x2x128xf32>,
    } else {
    }
    return
  }
  func.func @transform_0(%arg0: i32, %arg1: i32) -> (i32, i32, i32) {
    %c2_i32 = arith.constant 2 : i32
    %0 = arith.muli %arg0, %c2_i32 : i32
    %1 = arith.addi %0, %arg1 : i32
    %c0_i32 = arith.constant 0 : i32
    %c0_i32_0 = arith.constant 0 : i32
    %c0_i32_1 = arith.constant 0 : i32
    return %c0_i32, %c0_i32_0, %1 : i32, i32, i32
  }
  func.func @transform_1(%arg0: i32, %arg1: i32) -> (i32, i32) {
    %c0_i32 = arith.constant 0 : i32
    %c0_i32_0 = arith.constant 0 : i32
    %c0_i32_1 = arith.constant 0 : i32
    return %c0_i32, %c0_i32_0 : i32, i32
  }
  func.func @transform_2(%arg0: i32, %arg1: i32) -> (i32, i32, i32) {
    %c0_i32 = arith.constant 0 : i32
    %c0_i32_0 = arith.constant 0 : i32
    %c0_i32_1 = arith.constant 0 : i32
    return %arg0, %c0_i32, %c0_i32_0 : i32, i32, i32
  }
}

</mosaic_0001>

<llo_original>
// kernel: tpu_custom_call.1
$region0: #{tpu_custom_call.1}
  #allocation0 [shape = 'u32[]', space=smem, size = 0x4, offset = 0x4, fixed_abs, tag = 'smem constant byte address 0x4 - core index']
  #allocation1 [shape = 'u32[144,128]{1,0:T(1,128)}', space=vmem, size = 0x12000, scoped, tag = 'internal scratch']
  %s0 = inlined_call_operand.hbm [shape: f32[2,128,2048], index: 0, kind: input, shape index: {}]
  %s1 = inlined_call_operand.hbm [shape: f32[128,128], index: 1, kind: input, shape index: {}]
  %s2 = inlined_call_operand.hbm [shape: f32[2,2,128], index: 2, kind: output, shape index: {}]
  %s3 = sld [smem:[#allocation0]]
  $region57: #{tpu_custom_call.1} parent=0
    _
  %s5 = ssub.s32 1, %s3
  %s6 = scalar_select 0, %s5, %s3
  $region1: #{tpu_custom_call.1} parent=0
    #allocation2 [shape = 'u8[1048576]{0}', space=vmem, size = 0x100000, scoped, tag = 'input window, operand 0']
    #allocation3 [shape = 's32[2]{0}', space=sflag, size = 0x8, scoped, tag = 'scoped memory for tpu_custom_call.1']
    #allocation4 [shape = 's32[2]{0}', space=sflag, size = 0x8, scoped, tag = 'scoped memory for tpu_custom_call.1']
    #allocation5 [shape = 'u8[65536]{0}', space=vmem, size = 0x10000, scoped, tag = 'input window, operand 1, single buffered']
    #allocation6 [shape = 's32[1]{0}', space=sflag, size = 0x4, scoped, tag = 'scoped memory for tpu_custom_call.1']
    #allocation7 [shape = 'u8[2048]{0}', space=vmem, size = 0x800, scoped, tag = 'output window, operand 0']
    %7 = vsyncpa [#allocation3], 0
    %s8 = scalar_lea.sflag [#allocation3], 1
    %9 = vsyncpa %s8, 0
    %10 = vsyncpa [#allocation6], 0
    %11 = vsyncpa [#allocation4], 0
    %s12 = scalar_lea.sflag [#allocation4], 1
    %13 = vsyncpa %s12, 0
    loop: start=0, step=1, limit=6
    $region2: #{tpu_custom_call.1} parent=1 // loop_pre_header
      _
    $region3: #{tpu_custom_call.1} parent=1 // loop_header
      %s15 = sphi 0, %s19
      %p16 = scmp.ge.s32.totalorder %s15, 6
      %s22 = sphi 0, %s34
      %s23 = sphi 0, %s30
      %s24 = sphi 0, %s22
      %s25 = sphi 0, %s23
      %s26 = sphi 0, %s24
      %s27 = sphi 0, %s25
      %s41 = sphi 0, %s43
      %s44 = sphi 0, %s41
      %s45 = sphi 0, %s44
      %s61 = sphi 0, %s45
      %s65 = sphi 0, %s65
      %s67 = sphi 0, %s65
      %s68 = sphi 0, %s67
      %s82 = sphi 0, %s68
      %s88 = sphi 0, %s90
      %s91 = sphi 0, %s88
      %s92 = sphi 0, %s91
      %s108 = sphi 0, %s92
    $region4: #{tpu_custom_call.1} parent=1 // loop_header_branch
      %18 = sbr.rel (%p16) target = $region8
    $region5: #{tpu_custom_call.1} parent=1 // loop_body
      %s20 = ssub.s32 %s15, 1
      %s21 = ssub.s32 %s15, 2
      %s28 = sadd.s32 1, %s23
      %p29 = scmp.ge.s32.totalorder %s28, 2
      %s30 = scalar_select %p29, 0, %s28
      %s31 = sadd.s32 1, %s22
      %s32 = scalar_select %p29, %s31, %s22
      %p33 = scmp.ge.s32.totalorder %s32, 2
      %s34 = scalar_select %p33, 0, %s32
      %s35 = smul.u32 %s22, 2
      %s36 = sadd.s32 %s35, %s23
      %s37 = smul.u32 %s34, 2
      %s38 = sadd.s32 %s37, %s30
      %s39 = ssub.s32 %s36, %s38
      %p40 = scmp.eq.s32.totalorder %s39, 0
      %s42 = sadd.s32 %s41, 1
      %s43 = scalar_select %p40, %s41, %s42
      %p46 = pneg %p40
      %p47 = scmp.eq.s32.totalorder %s15, 3
      %p48 = por %p46, %p47
      %p49 = scmp.ne.s32.totalorder %s41, %s44
      %p50 = scmp.eq.s32.totalorder %s15, 0
      %p51 = por %p49, %p50
      %p52 = scmp.ne.s32.totalorder %s41, %s44
      %p53 = scmp.eq.s32.totalorder %s20, 3
      %p54 = por %p52, %p53
      %p55 = scmp.ne.s32.totalorder %s44, %s45
      %p56 = scmp.eq.s32.totalorder %s20, 0
      %p57 = por %p55, %p56
      %p58 = scmp.ne.s32.totalorder %s44, %s45
      %p59 = scmp.eq.s32.totalorder %s21, 3
      %p60 = por %p58, %p59
      %p62 = scmp.ne.s32.totalorder %s45, %s61
      %p63 = scmp.eq.s32.totalorder %s21, 0
      %p64 = por %p62, %p63
      %s66 = sadd.s32 %s65, 1
      %p69 = scmp.eq.s32.totalorder %s15, 3
      %p70 = scmp.ne.s32.totalorder %s65, %s67
      %p71 = scmp.eq.s32.totalorder %s15, 0
      %p72 = por %p70, %p71
      %p73 = scmp.ne.s32.totalorder %s65, %s67
      %p74 = scmp.eq.s32.totalorder %s20, 3
      %p75 = por %p73, %p74
      %p76 = scmp.ne.s32.totalorder %s67, %s68
      %p77 = scmp.eq.s32.totalorder %s20, 0
      %p78 = por %p76, %p77
      %p79 = scmp.ne.s32.totalorder %s67, %s68
      %p80 = scmp.eq.s32.totalorder %s21, 3
      %p81 = por %p79, %p80
      %p83 = scmp.ne.s32.totalorder %s68, %s82
      %p84 = scmp.eq.s32.totalorder %s21, 0
      %p85 = por %p83, %p84
      %s86 = ssub.s32 %s22, %s34
      %p87 = scmp.eq.s32.totalorder %s86, 0
      %s89 = sadd.s32 %s88, 1
      %s90 = scalar_select %p87, %s88, %s89
      %p93 = pneg %p87
      %p94 = scmp.eq.s32.totalorder %s15, 3
      %p95 = por %p93, %p94
      %p96 = scmp.ne.s32.totalorder %s88, %s91
      %p97 = scmp.eq.s32.totalorder %s15, 0
      %p98 = por %p96, %p97
      %p99 = scmp.ne.s32.totalorder %s88, %s91
      %p100 = scmp.eq.s32.totalorder %s20, 3
      %p101 = por %p99, %p100
      %p102 = scmp.ne.s32.totalorder %s91, %s92
      %p103 = scmp.eq.s32.totalorder %s20, 0
      %p104 = por %p102, %p103
      %p105 = scmp.ne.s32.totalorder %s91, %s92
      %p106 = scmp.eq.s32.totalorder %s21, 3
      %p107 = por %p105, %p106
      %p109 = scmp.ne.s32.totalorder %s92, %s108
      %p110 = scmp.eq.s32.totalorder %s21, 0
      %p111 = por %p109, %p110
      %p112 = scmp.le.s32.totalorder 1, %s15
      %p113 = scmp.lt.s32.totalorder %s15, 5
      %p114 = pnand %p112, %p113
      %p115 = pneg %p114
      // Predicated region
      $region9: #{tpu_custom_call.1} parent=5 // pred_check
        _
      $region10: #{tpu_custom_call.1} parent=5 // pred_check_branch
        %117 = sbr.rel (%p114) target = $region12
      $region11: #{tpu_custom_call.1} parent=5 // pred_region
        %s118 = ssub.s32 %s15, 1
        // Predicated region
        $region13: #{tpu_custom_call.1} parent=11 // pred_check
          %p119 = pneg %p78
        $region14: #{tpu_custom_call.1} parent=11 // pred_check_branch
          %121 = sbr.rel (%p119) target = $region16
        $region15: #{tpu_custom_call.1} parent=11 // pred_region
          %s123 = ssub.s32 2048, 2048
          %124 = vsyncadd [#allocation6], %s123
          %s125 = sshll.u32 [#allocation5], 4
          %s126 = int_to_ptr.vmem [resolvable:$true] %s125
          %131 = dma.hbm_to_vmem [thread:$0]  %s1, 2048, %s126, [#allocation6], 128, 128, 8
        $region16: #{tpu_custom_call.1} parent=11 // pred_fallthru
          _
      $region12: #{tpu_custom_call.1} parent=5 // pred_fallthru
        _
      %p132 = scmp.lt.s32.totalorder %s15, 4
      // Predicated region
      $region17: #{tpu_custom_call.1} parent=5 // pred_check
        %p133 = pneg %p132
      $region18: #{tpu_custom_call.1} parent=5 // pred_check_branch
        %135 = sbr.rel (%p133) target = $region20
      $region19: #{tpu_custom_call.1} parent=5 // pred_region
        // Predicated region
        $region21: #{tpu_custom_call.1} parent=19 // pred_check
          %p136 = pneg %p51
        $region22: #{tpu_custom_call.1} parent=19 // pred_check_branch
          %138 = sbr.rel (%p136) target = $region24
        $region23: #{tpu_custom_call.1} parent=19 // pred_region
          %s139 = sand.u32 %s41, 1
          %s140 = scalar_lea.sflag [#allocation3], %s139
          %s141 = sand.u32 %s41, 1
          %s142 = smul.addr %s141, 1024
          %s143 = scalar_lea.vmem [#allocation2], %s142
          %s144 = smul.u32 %s22, 2
          %s145 = sadd.s32 %s144, %s23
          %s146 = smul.u32 4, %s145
          %s148 = ssub.s32 16384, 16384
          %149 = vsyncadd %s140, %s148
          %s150 = smul.addr %s146, 128
          %s151 = scalar_lea.hbm %s0, %s150
          %s152 = sshll.u32 %s143, 4
          %s153 = int_to_ptr.vmem [resolvable:$true] %s152
          %158 = dma.hbm_to_vmem [thread:$0]  %s151, 16384, %s153, %s140, 2048, 512, 32
        $region24: #{tpu_custom_call.1} parent=19 // pred_fallthru
          _
      $region20: #{tpu_custom_call.1} parent=5 // pred_fallthru
        _
      %p159 = scmp.le.s32.totalorder 1, %s15
      %p160 = scmp.lt.s32.totalorder %s15, 5
      %p161 = pnand %p159, %p160
      %p162 = pneg %p161
      // Predicated region
      $region25: #{tpu_custom_call.1} parent=5 // pred_check
        _
      $region26: #{tpu_custom_call.1} parent=5 // pred_check_branch
        %164 = sbr.rel (%p161) target = $region28
      $region27: #{tpu_custom_call.1} parent=5 // pred_region
        %s165 = ssub.s32 %s15, 1
        %s166 = sand.u32 %s44, 1
        %s167 = scalar_lea.sflag [#allocation3], %s166
        %s168 = sand.u32 %s44, 1
        %s169 = smul.addr %s168, 1024
        %s170 = scalar_lea.vmem [#allocation2], %s169
        // Predicated region
        $region29: #{tpu_custom_call.1} parent=27 // pred_check
          %p171 = pneg %p57
        $region30: #{tpu_custom_call.1} parent=27 // pred_check_branch
          %173 = sbr.rel (%p171) target = $region32
        $region31: #{tpu_custom_call.1} parent=27 // pred_region
          %174 = dma.done %s167, 16384
        $region32: #{tpu_custom_call.1} parent=27 // pred_fallthru
          _
        // Predicated region
        $region33: #{tpu_custom_call.1} parent=27 // pred_check
          %p175 = pneg %p78
        $region34: #{tpu_custom_call.1} parent=27 // pred_check_branch
          %177 = sbr.rel (%p175) target = $region36
        $region35: #{tpu_custom_call.1} parent=27 // pred_region
          %178 = dma.done [#allocation6], 2048
        $region36: #{tpu_custom_call.1} parent=27 // pred_fallthru
          _
        %s179 = sand.u32 %s44, 1
        %s180 = scalar_lea.sflag [#allocation3], %s179
        %s181 = sand.u32 %s44, 1
        %s182 = smul.addr %s181, 1024
        %s183 = scalar_lea.vmem [#allocation2], %s182
        %p184 = pneg %p57
        %p185 = pneg %p54
        %p186 = pneg %p78
        %p187 = pneg %p75
        %p188 = pneg %p104
        %p189 = pneg %p101
        %s190 = sand.u32 %s91, 1
        %s191 = scalar_lea.sflag [#allocation4], %s190
        %s192 = sand.u32 %s91, 1
        %s193 = smul.addr %s192, 2
        %s194 = scalar_lea.vmem [#allocation7], %s193
        %s195 = smul.u32 %s24, 2
        %s196 = sadd.s32 %s195, %s25
        %s197 = smul.u32 4, %s196
        %p198 = scmp.eq.s32.totalorder %s25, 0
        // Predicated region
        $region37: #{tpu_custom_call.1} parent=27 // pred_check
          %p199 = pneg %p198
        $region38: #{tpu_custom_call.1} parent=27 // pred_check_branch
          %201 = sbr.rel (%p199) target = $region40
        $region39: #{tpu_custom_call.1} parent=27 // pred_region
          %202 = vst [vmem:[%s194] sm:$0x3] 0.0
        $region40: #{tpu_custom_call.1} parent=27 // pred_fallthru
          _
        %v203 = vld [vmem:[%s194] sm:$0x3]
        %v204 = vld [vmem:[%s170] sm:$0xff]
        %v205 = vld [vmem:[%s170 + $0x8] sm:$0xff]
        %v206 = vld [vmem:[%s170 + $0x10] sm:$0xff]
        %v207 = vld [vmem:[%s170 + $0x18] sm:$0xff]
        %v208 = vld [vmem:[%s170 + $0x20] sm:$0xff]
        %v209 = vld [vmem:[%s170 + $0x28] sm:$0xff]
        %v210 = vld [vmem:[%s170 + $0x30] sm:$0xff]
        %v211 = vld [vmem:[%s170 + $0x38] sm:$0xff]
        %v212 = vld [vmem:[%s170 + $0x40] sm:$0xff]
        %v213 = vld [vmem:[%s170 + $0x48] sm:$0xff]
        %v214 = vld [vmem:[%s170 + $0x50] sm:$0xff]
        %v215 = vld [vmem:[%s170 + $0x58] sm:$0xff]
        %v216 = vld [vmem:[%s170 + $0x60] sm:$0xff]
        %v217 = vld [vmem:[%s170 + $0x68] sm:$0xff]
        %v218 = vld [vmem:[%s170 + $0x70] sm:$0xff]
        %v219 = vld [vmem:[%s170 + $0x78] sm:$0xff]
        %v220 = vld [vmem:[%s170 + $0x80] sm:$0xff]
        %v221 = vld [vmem:[%s170 + $0x88] sm:$0xff]
        %v222 = vld [vmem:[%s170 + $0x90] sm:$0xff]
        %v223 = vld [vmem:[%s170 + $0x98] sm:$0xff]
        %v224 = vld [vmem:[%s170 + $0xa0] sm:$0xff]
        %v225 = vld [vmem:[%s170 + $0xa8] sm:$0xff]
        %v226 = vld [vmem:[%s170 + $0xb0] sm:$0xff]
        %v227 = vld [vmem:[%s170 + $0xb8] sm:$0xff]
        %v228 = vld [vmem:[%s170 + $0xc0] sm:$0xff]
        %v229 = vld [vmem:[%s170 + $0xc8] sm:$0xff]
        %v230 = vld [vmem:[%s170 + $0xd0] sm:$0xff]
        %v231 = vld [vmem:[%s170 + $0xd8] sm:$0xff]
        %v232 = vld [vmem:[%s170 + $0xe0] sm:$0xff]
        %v233 = vld [vmem:[%s170 + $0xe8] sm:$0xff]
        %v234 = vld [vmem:[%s170 + $0xf0] sm:$0xff]
        %v235 = vld [vmem:[%s170 + $0xf8] sm:$0xff]
        %v236 = vld [vmem:[%s170 + $0x100] sm:$0xff]
        %v237 = vld [vmem:[%s170 + $0x108] sm:$0xff]
        %v238 = vld [vmem:[%s170 + $0x110] sm:$0xff]
        %v239 = vld [vmem:[%s170 + $0x118] sm:$0xff]
        %v240 = vld [vmem:[%s170 + $0x120] sm:$0xff]
        %v241 = vld [vmem:[%s170 + $0x128] sm:$0xff]
        %v242 = vld [vmem:[%s170 + $0x130] sm:$0xff]
        %v243 = vld [vmem:[%s170 + $0x138] sm:$0xff]
        %v244 = vld [vmem:[%s170 + $0x140] sm:$0xff]
        %v245 = vld [vmem:[%s170 + $0x148] sm:$0xff]
        %v246 = vld [vmem:[%s170 + $0x150] sm:$0xff]
        %v247 = vld [vmem:[%s170 + $0x158] sm:$0xff]
        %v248 = vld [vmem:[%s170 + $0x160] sm:$0xff]
        %v249 = vld [vmem:[%s170 + $0x168] sm:$0xff]
        %v250 = vld [vmem:[%s170 + $0x170] sm:$0xff]
        %v251 = vld [vmem:[%s170 + $0x178] sm:$0xff]
        %v252 = vld [vmem:[%s170 + $0x180] sm:$0xff]
        %v253 = vld [vmem:[%s170 + $0x188] sm:$0xff]
        %v254 = vld [vmem:[%s170 + $0x190] sm:$0xff]
        %v255 = vld [vmem:[%s170 + $0x198] sm:$0xff]
        %v256 = vld [vmem:[%s170 + $0x1a0] sm:$0xff]
        %v257 = vld [vmem:[%s170 + $0x1a8] sm:$0xff]
        %v258 = vld [vmem:[%s170 + $0x1b0] sm:$0xff]
        %v259 = vld [vmem:[%s170 + $0x1b8] sm:$0xff]
        %v260 = vld [vmem:[%s170 + $0x1c0] sm:$0xff]
        %v261 = vld [vmem:[%s170 + $0x1c8] sm:$0xff]
        %v262 = vld [vmem:[%s170 + $0x1d0] sm:$0xff]
        %v263 = vld [vmem:[%s170 + $0x1d8] sm:$0xff]
        %v264 = vld [vmem:[%s170 + $0x1e0] sm:$0xff]
        %v265 = vld [vmem:[%s170 + $0x1e8] sm:$0xff]
        %v266 = vld [vmem:[%s170 + $0x1f0] sm:$0xff]
        %v267 = vld [vmem:[%s170 + $0x1f8] sm:$0xff]
        %v268 = vld [vmem:[%s170 + $0x200] sm:$0xff]
        %v269 = vld [vmem:[%s170 + $0x208] sm:$0xff]
        %v270 = vld [vmem:[%s170 + $0x210] sm:$0xff]
        %v271 = vld [vmem:[%s170 + $0x218] sm:$0xff]
        %v272 = vld [vmem:[%s170 + $0x220] sm:$0xff]
        %v273 = vld [vmem:[%s170 + $0x228] sm:$0xff]
        %v274 = vld [vmem:[%s170 + $0x230] sm:$0xff]
        %v275 = vld [vmem:[%s170 + $0x238] sm:$0xff]
        %v276 = vld [vmem:[%s170 + $0x240] sm:$0xff]
        %v277 = vld [vmem:[%s170 + $0x248] sm:$0xff]
        %v278 = vld [vmem:[%s170 + $0x250] sm:$0xff]
        %v279 = vld [vmem:[%s170 + $0x258] sm:$0xff]
        %v280 = vld [vmem:[%s170 + $0x260] sm:$0xff]
        %v281 = vld [vmem:[%s170 + $0x268] sm:$0xff]
        %v282 = vld [vmem:[%s170 + $0x270] sm:$0xff]
        %v283 = vld [vmem:[%s170 + $0x278] sm:$0xff]
        %v284 = vld [vmem:[%s170 + $0x280] sm:$0xff]
        %v285 = vld [vmem:[%s170 + $0x288] sm:$0xff]
        %v286 = vld [vmem:[%s170 + $0x290] sm:$0xff]
        %v287 = vld [vmem:[%s170 + $0x298] sm:$0xff]
        %v288 = vld [vmem:[%s170 + $0x2a0] sm:$0xff]
        %v289 = vld [vmem:[%s170 + $0x2a8] sm:$0xff]
        %v290 = vld [vmem:[%s170 + $0x2b0] sm:$0xff]
        %v291 = vld [vmem:[%s170 + $0x2b8] sm:$0xff]
        %v292 = vld [vmem:[%s170 + $0x2c0] sm:$0xff]
        %v293 = vld [vmem:[%s170 + $0x2c8] sm:$0xff]
        %v294 = vld [vmem:[%s170 + $0x2d0] sm:$0xff]
        %v295 = vld [vmem:[%s170 + $0x2d8] sm:$0xff]
        %v296 = vld [vmem:[%s170 + $0x2e0] sm:$0xff]
        %v297 = vld [vmem:[%s170 + $0x2e8] sm:$0xff]
        %v298 = vld [vmem:[%s170 + $0x2f0] sm:$0xff]
        %v299 = vld [vmem:[%s170 + $0x2f8] sm:$0xff]
        %v300 = vld [vmem:[%s170 + $0x300] sm:$0xff]
        %v301 = vld [vmem:[%s170 + $0x308] sm:$0xff]
        %v302 = vld [vmem:[%s170 + $0x310] sm:$0xff]
        %v303 = vld [vmem:[%s170 + $0x318] sm:$0xff]
        %v304 = vld [vmem:[%s170 + $0x320] sm:$0xff]
        %v305 = vld [vmem:[%s170 + $0x328] sm:$0xff]
        %v306 = vld [vmem:[%s170 + $0x330] sm:$0xff]
        %v307 = vld [vmem:[%s170 + $0x338] sm:$0xff]
        %v308 = vld [vmem:[%s170 + $0x340] sm:$0xff]
        %v309 = vld [vmem:[%s170 + $0x348] sm:$0xff]
        %v310 = vld [vmem:[%s170 + $0x350] sm:$0xff]
        %v311 = vld [vmem:[%s170 + $0x358] sm:$0xff]
        %v312 = vld [vmem:[%s170 + $0x360] sm:$0xff]
        %v313 = vld [vmem:[%s170 + $0x368] sm:$0xff]
        %v314 = vld [vmem:[%s170 + $0x370] sm:$0xff]
        %v315 = vld [vmem:[%s170 + $0x378] sm:$0xff]
        %v316 = vld [vmem:[%s170 + $0x380] sm:$0xff]
        %v317 = vld [vmem:[%s170 + $0x388] sm:$0xff]
        %v318 = vld [vmem:[%s170 + $0x390] sm:$0xff]
        %v319 = vld [vmem:[%s170 + $0x398] sm:$0xff]
        %v320 = vld [vmem:[%s170 + $0x3a0] sm:$0xff]
        %v321 = vld [vmem:[%s170 + $0x3a8] sm:$0xff]
        %v322 = vld [vmem:[%s170 + $0x3b0] sm:$0xff]
        %v323 = vld [vmem:[%s170 + $0x3b8] sm:$0xff]
        %v324 = vld [vmem:[%s170 + $0x3c0] sm:$0xff]
        %v325 = vld [vmem:[%s170 + $0x3c8] sm:$0xff]
        %v326 = vld [vmem:[%s170 + $0x3d0] sm:$0xff]
        %v327 = vld [vmem:[%s170 + $0x3d8] sm:$0xff]
        %v328 = vld [vmem:[%s170 + $0x3e0] sm:$0xff]
        %v329 = vld [vmem:[%s170 + $0x3e8] sm:$0xff]
        %v330 = vld [vmem:[%s170 + $0x3f0] sm:$0xff]
        %v331 = vld [vmem:[%s170 + $0x3f8] sm:$0xff]
        %v332 = vadd.f32 %v204, %v205
        %v333 = vadd.f32 %v332, %v206
        %v334 = vadd.f32 %v333, %v207
        %335 = vadd.xlane.f32.xlu0 %v334
        %v336 = vpop.xlane.xlu0 %335
        %v337 = vadd.f32 %v208, %v209
        %v338 = vadd.f32 %v337, %v210
        %v339 = vadd.f32 %v338, %v211
        %340 = vadd.xlane.f32.xlu0 %v339
        %v341 = vpop.xlane.xlu0 %340
        %v342 = vadd.f32 %v212, %v213
        %v343 = vadd.f32 %v342, %v214
        %v344 = vadd.f32 %v343, %v215
        %345 = vadd.xlane.f32.xlu0 %v344
        %v346 = vpop.xlane.xlu0 %345
        %v347 = vadd.f32 %v216, %v217
        %v348 = vadd.f32 %v347, %v218
        %v349 = vadd.f32 %v348, %v219
        %350 = vadd.xlane.f32.xlu0 %v349
        %v351 = vpop.xlane.xlu0 %350
        %v352 = vadd.f32 %v220, %v221
        %v353 = vadd.f32 %v352, %v222
        %v354 = vadd.f32 %v353, %v223
        %355 = vadd.xlane.f32.xlu0 %v354
        %v356 = vpop.xlane.xlu0 %355
        %v357 = vadd.f32 %v224, %v225
        %v358 = vadd.f32 %v357, %v226
        %v359 = vadd.f32 %v358, %v227
        %360 = vadd.xlane.f32.xlu0 %v359
        %v361 = vpop.xlane.xlu0 %360
        %v362 = vadd.f32 %v228, %v229
        %v363 = vadd.f32 %v362, %v230
        %v364 = vadd.f32 %v363, %v231
        %365 = vadd.xlane.f32.xlu0 %v364
        %v366 = vpop.xlane.xlu0 %365
        %v367 = vadd.f32 %v232, %v233
        %v368 = vadd.f32 %v367, %v234
        %v369 = vadd.f32 %v368, %v235
        %370 = vadd.xlane.f32.xlu0 %v369
        %v371 = vpop.xlane.xlu0 %370
        %v372 = vadd.f32 %v236, %v237
        %v373 = vadd.f32 %v372, %v238
        %v374 = vadd.f32 %v373, %v239
        %375 = vadd.xlane.f32.xlu0 %v374
        %v376 = vpop.xlane.xlu0 %375
        %v377 = vadd.f32 %v240, %v241
        %v378 = vadd.f32 %v377, %v242
        %v379 = vadd.f32 %v378, %v243
        %380 = vadd.xlane.f32.xlu0 %v379
        %v381 = vpop.xlane.xlu0 %380
        %v382 = vadd.f32 %v244, %v245
        %v383 = vadd.f32 %v382, %v246
        %v384 = vadd.f32 %v383, %v247
        %385 = vadd.xlane.f32.xlu0 %v384
        %v386 = vpop.xlane.xlu0 %385
        %v387 = vadd.f32 %v248, %v249
        %v388 = vadd.f32 %v387, %v250
        %v389 = vadd.f32 %v388, %v251
        %390 = vadd.xlane.f32.xlu0 %v389
        %v391 = vpop.xlane.xlu0 %390
        %v392 = vadd.f32 %v252, %v253
        %v393 = vadd.f32 %v392, %v254
        %v394 = vadd.f32 %v393, %v255
        %395 = vadd.xlane.f32.xlu0 %v394
        %v396 = vpop.xlane.xlu0 %395
        %v397 = vadd.f32 %v256, %v257
        %v398 = vadd.f32 %v397, %v258
        %v399 = vadd.f32 %v398, %v259
        %400 = vadd.xlane.f32.xlu0 %v399
        %v401 = vpop.xlane.xlu0 %400
        %v402 = vadd.f32 %v260, %v261
        %v403 = vadd.f32 %v402, %v262
        %v404 = vadd.f32 %v403, %v263
        %405 = vadd.xlane.f32.xlu0 %v404
        %v406 = vpop.xlane.xlu0 %405
        %v407 = vadd.f32 %v264, %v265
        %v408 = vadd.f32 %v407, %v266
        %v409 = vadd.f32 %v408, %v267
        %410 = vadd.xlane.f32.xlu0 %v409
        %v411 = vpop.xlane.xlu0 %410
        %v412 = vadd.f32 %v268, %v269
        %v413 = vadd.f32 %v412, %v270
        %v414 = vadd.f32 %v413, %v271
        %415 = vadd.xlane.f32.xlu0 %v414
        %v416 = vpop.xlane.xlu0 %415
        %v417 = vadd.f32 %v272, %v273
        %v418 = vadd.f32 %v417, %v274
        %v419 = vadd.f32 %v418, %v275
        %420 = vadd.xlane.f32.xlu0 %v419
        %v421 = vpop.xlane.xlu0 %420
        %v422 = vadd.f32 %v276, %v277
        %v423 = vadd.f32 %v422, %v278
        %v424 = vadd.f32 %v423, %v279
        %425 = vadd.xlane.f32.xlu0 %v424
        %v426 = vpop.xlane.xlu0 %425
        %v427 = vadd.f32 %v280, %v281
        %v428 = vadd.f32 %v427, %v282
        %v429 = vadd.f32 %v428, %v283
        %430 = vadd.xlane.f32.xlu0 %v429
        %v431 = vpop.xlane.xlu0 %430
        %v432 = vadd.f32 %v284, %v285
        %v433 = vadd.f32 %v432, %v286
        %v434 = vadd.f32 %v433, %v287
        %435 = vadd.xlane.f32.xlu0 %v434
        %v436 = vpop.xlane.xlu0 %435
        %v437 = vadd.f32 %v288, %v289
        %v438 = vadd.f32 %v437, %v290
        %v439 = vadd.f32 %v438, %v291
        %440 = vadd.xlane.f32.xlu0 %v439
        %v441 = vpop.xlane.xlu0 %440
        %v442 = vadd.f32 %v292, %v293
        %v443 = vadd.f32 %v442, %v294
        %v444 = vadd.f32 %v443, %v295
        %445 = vadd.xlane.f32.xlu0 %v444
        %v446 = vpop.xlane.xlu0 %445
        %v447 = vadd.f32 %v296, %v297
        %v448 = vadd.f32 %v447, %v298
        %v449 = vadd.f32 %v448, %v299
        %450 = vadd.xlane.f32.xlu0 %v449
        %v451 = vpop.xlane.xlu0 %450
        %v452 = vadd.f32 %v300, %v301
        %v453 = vadd.f32 %v452, %v302
        %v454 = vadd.f32 %v453, %v303
        %455 = vadd.xlane.f32.xlu0 %v454
        %v456 = vpop.xlane.xlu0 %455
        %v457 = vadd.f32 %v304, %v305
        %v458 = vadd.f32 %v457, %v306
        %v459 = vadd.f32 %v458, %v307
        %460 = vadd.xlane.f32.xlu0 %v459
        %v461 = vpop.xlane.xlu0 %460
        %v462 = vadd.f32 %v308, %v309
        %v463 = vadd.f32 %v462, %v310
        %v464 = vadd.f32 %v463, %v311
        %465 = vadd.xlane.f32.xlu0 %v464
        %v466 = vpop.xlane.xlu0 %465
        %v467 = vadd.f32 %v312, %v313
        %v468 = vadd.f32 %v467, %v314
        %v469 = vadd.f32 %v468, %v315
        %470 = vadd.xlane.f32.xlu0 %v469
        %v471 = vpop.xlane.xlu0 %470
        %v472 = vadd.f32 %v316, %v317
        %v473 = vadd.f32 %v472, %v318
        %v474 = vadd.f32 %v473, %v319
        %475 = vadd.xlane.f32.xlu0 %v474
        %v476 = vpop.xlane.xlu0 %475
        %v477 = vadd.f32 %v320, %v321
        %v478 = vadd.f32 %v477, %v322
        %v479 = vadd.f32 %v478, %v323
        %480 = vadd.xlane.f32.xlu0 %v479
        %v481 = vpop.xlane.xlu0 %480
        %v482 = vadd.f32 %v324, %v325
        %v483 = vadd.f32 %v482, %v326
        %v484 = vadd.f32 %v483, %v327
        %485 = vadd.xlane.f32.xlu0 %v484
        %v486 = vpop.xlane.xlu0 %485
        %v487 = vadd.f32 %v328, %v329
        %v488 = vadd.f32 %v487, %v330
        %v489 = vadd.f32 %v488, %v331
        %490 = vadd.xlane.f32.xlu0 %v489
        %v491 = vpop.xlane.xlu0 %490
        %v524 = vlaneseq
        %v525 = vand.u32 %v524, 127
        %v526 = vlaneseq
        %v527 = vshrl.u32 %v526, 7
        %v528 = vsub.s32 %v525, %v527
        %v529 = vrot.slane %v336, %v528
        %v530 = vadd.s32 %v525, 4294967288
        %v531 = vlaneseq
        %v532 = vshrl.u32 %v531, 7
        %v533 = vsub.s32 %v530, %v532
        %v534 = vrot.slane %v341, %v533
        %vm535 = vcmask 130112
        %v536 = vsel %vm535, %v534, %v529
        %v537 = vadd.s32 %v525, 4294967280
        %v538 = vlaneseq
        %v539 = vshrl.u32 %v538, 7
        %v540 = vsub.s32 %v537, %v539
        %v541 = vrot.slane %v346, %v540
        %vm542 = vcmask 195712
        %v543 = vsel %vm542, %v541, %v536
        %v544 = vadd.s32 %v525, 4294967272
        %v545 = vlaneseq
        %v546 = vshrl.u32 %v545, 7
        %v547 = vsub.s32 %v544, %v546
        %v548 = vrot.slane %v351, %v547
        %vm549 = vcmask 261312
        %v550 = vsel %vm549, %v548, %v543
        %v551 = vadd.s32 %v525, 4294967264
        %v552 = vlaneseq
        %v553 = vshrl.u32 %v552, 7
        %v554 = vsub.s32 %v551, %v553
        %v555 = vrot.slane %v356, %v554
        %vm556 = vcmask 326912
        %v557 = vsel %vm556, %v555, %v550
        %v558 = vadd.s32 %v525, 4294967256
        %v559 = vlaneseq
        %v560 = vshrl.u32 %v559, 7
        %v561 = vsub.s32 %v558, %v560
        %v562 = vrot.slane %v361, %v561
        %vm563 = vcmask 392512
        %v564 = vsel %vm563, %v562, %v557
        %v565 = vadd.s32 %v525, 4294967248
        %v566 = vlaneseq
        %v567 = vshrl.u32 %v566, 7
        %v568 = vsub.s32 %v565, %v567
        %v569 = vrot.slane %v366, %v568
        %vm570 = vcmask 458112
        %v571 = vsel %vm570, %v569, %v564
        %v572 = vadd.s32 %v525, 4294967240
        %v573 = vlaneseq
        %v574 = vshrl.u32 %v573, 7
        %v575 = vsub.s32 %v572, %v574
        %v576 = vrot.slane %v371, %v575
        %vm577 = vcmask 523712
        %v578 = vsel %vm577, %v576, %v571
        %v579 = vadd.s32 %v525, 4294967232
        %v580 = vlaneseq
        %v581 = vshrl.u32 %v580, 7
        %v582 = vsub.s32 %v579, %v581
        %v583 = vrot.slane %v376, %v582
        %vm584 = vcmask 589312
        %v585 = vsel %vm584, %v583, %v578
        %v586 = vadd.s32 %v525, 4294967224
        %v587 = vlaneseq
        %v588 = vshrl.u32 %v587, 7
        %v589 = vsub.s32 %v586, %v588
        %v590 = vrot.slane %v381, %v589
        %vm591 = vcmask 654912
        %v592 = vsel %vm591, %v590, %v585
        %v593 = vadd.s32 %v525, 4294967216
        %v594 = vlaneseq
        %v595 = vshrl.u32 %v594, 7
        %v596 = vsub.s32 %v593, %v595
        %v597 = vrot.slane %v386, %v596
        %vm598 = vcmask 720512
        %v599 = vsel %vm598, %v597, %v592
        %v600 = vadd.s32 %v525, 4294967208
        %v601 = vlaneseq
        %v602 = vshrl.u32 %v601, 7
        %v603 = vsub.s32 %v600, %v602
        %v604 = vrot.slane %v391, %v603
        %vm605 = vcmask 786112
        %v606 = vsel %vm605, %v604, %v599
        %v607 = vadd.s32 %v525, 4294967200
        %v608 = vlaneseq
        %v609 = vshrl.u32 %v608, 7
        %v610 = vsub.s32 %v607, %v609
        %v611 = vrot.slane %v396, %v610
        %vm612 = vcmask 851712
        %v613 = vsel %vm612, %v611, %v606
        %v614 = vadd.s32 %v525, 4294967192
        %v615 = vlaneseq
        %v616 = vshrl.u32 %v615, 7
        %v617 = vsub.s32 %v614, %v616
        %v618 = vrot.slane %v401, %v617
        %vm619 = vcmask 917312
        %v620 = vsel %vm619, %v618, %v613
        %v621 = vadd.s32 %v525, 4294967184
        %v622 = vlaneseq
        %v623 = vshrl.u32 %v622, 7
        %v624 = vsub.s32 %v621, %v623
        %v625 = vrot.slane %v406, %v624
        %vm626 = vcmask 982912
        %v627 = vsel %vm626, %v625, %v620
        %v628 = vadd.s32 %v525, 4294967176
        %v629 = vlaneseq
        %v630 = vshrl.u32 %v629, 7
        %v631 = vsub.s32 %v628, %v630
        %v632 = vrot.slane %v411, %v631
        %vm633 = vcmask 1048512
        %v634 = vsel %vm633, %v632, %v627
        %v635 = vlaneseq
        %v636 = vshrl.u32 %v635, 7
        %v637 = vsub.s32 %v525, %v636
        %v638 = vrot.slane %v416, %v637
        %v639 = vlaneseq
        %v640 = vshrl.u32 %v639, 7
        %v641 = vsub.s32 %v530, %v640
        %v642 = vrot.slane %v421, %v641
        %v643 = vsel %vm535, %v642, %v638
        %v644 = vlaneseq
        %v645 = vshrl.u32 %v644, 7
        %v646 = vsub.s32 %v537, %v645
        %v647 = vrot.slane %v426, %v646
        %v648 = vsel %vm542, %v647, %v643
        %v649 = vlaneseq
        %v650 = vshrl.u32 %v649, 7
        %v651 = vsub.s32 %v544, %v650
        %v652 = vrot.slane %v431, %v651
        %v653 = vsel %vm549, %v652, %v648
        %v654 = vlaneseq
        %v655 = vshrl.u32 %v654, 7
        %v656 = vsub.s32 %v551, %v655
        %v657 = vrot.slane %v436, %v656
        %v658 = vsel %vm556, %v657, %v653
        %v659 = vlaneseq
        %v660 = vshrl.u32 %v659, 7
        %v661 = vsub.s32 %v558, %v660
        %v662 = vrot.slane %v441, %v661
        %v663 = vsel %vm563, %v662, %v658
        %v664 = vlaneseq
        %v665 = vshrl.u32 %v664, 7
        %v666 = vsub.s32 %v565, %v665
        %v667 = vrot.slane %v446, %v666
        %v668 = vsel %vm570, %v667, %v663
        %v669 = vlaneseq
        %v670 = vshrl.u32 %v669, 7
        %v671 = vsub.s32 %v572, %v670
        %v672 = vrot.slane %v451, %v671
        %v673 = vsel %vm577, %v672, %v668
        %v674 = vlaneseq
        %v675 = vshrl.u32 %v674, 7
        %v676 = vsub.s32 %v579, %v675
        %v677 = vrot.slane %v456, %v676
        %v678 = vsel %vm584, %v677, %v673
        %v679 = vlaneseq
        %v680 = vshrl.u32 %v679, 7
        %v681 = vsub.s32 %v586, %v680
        %v682 = vrot.slane %v461, %v681
        %v683 = vsel %vm591, %v682, %v678
        %v684 = vlaneseq
        %v685 = vshrl.u32 %v684, 7
        %v686 = vsub.s32 %v593, %v685
        %v687 = vrot.slane %v466, %v686
        %v688 = vsel %vm598, %v687, %v683
        %v689 = vlaneseq
        %v690 = vshrl.u32 %v689, 7
        %v691 = vsub.s32 %v600, %v690
        %v692 = vrot.slane %v471, %v691
        %v693 = vsel %vm605, %v692, %v688
        %v694 = vlaneseq
        %v695 = vshrl.u32 %v694, 7
        %v696 = vsub.s32 %v607, %v695
        %v697 = vrot.slane %v476, %v696
        %v698 = vsel %vm612, %v697, %v693
        %v699 = vlaneseq
        %v700 = vshrl.u32 %v699, 7
        %v701 = vsub.s32 %v614, %v700
        %v702 = vrot.slane %v481, %v701
        %v703 = vsel %vm619, %v702, %v698
        %v704 = vlaneseq
        %v705 = vshrl.u32 %v704, 7
        %v706 = vsub.s32 %v621, %v705
        %v707 = vrot.slane %v486, %v706
        %v708 = vsel %vm626, %v707, %v703
        %v709 = vlaneseq
        %v710 = vshrl.u32 %v709, 7
        %v711 = vsub.s32 %v628, %v710
        %v712 = vrot.slane %v491, %v711
        %v713 = vsel %vm633, %v712, %v708
        %vm714 = vcmask 1041409
        %v715 = vsel %vm714, %v713, %v634
        %v717 = vadd.f32 %v203, %v715
        %718 = vst [vmem:[%s194] sm:$0x3] %v717
        %p719 = scmp.eq.s32.totalorder %s25, 1
        // Predicated region
        $region41: #{tpu_custom_call.1} parent=27 // pred_check
          %p720 = pneg %p719
        $region42: #{tpu_custom_call.1} parent=27 // pred_check_branch
          %722 = sbr.rel (%p720) target = $region44
        $region43: #{tpu_custom_call.1} parent=27 // pred_region
          %v723 = vld [vmem:[%s194] sm:$0x3]
          %v724 = vmul.f32 %v723, 0.00048828125
          %v725 = vld [vmem:[#allocation5] sm:$0xff]
          %v726 = vld [vmem:[#allocation5 + $0x8] sm:$0xff]
          %v727 = vld [vmem:[#allocation5 + $0x10] sm:$0xff]
          %v728 = vld [vmem:[#allocation5 + $0x18] sm:$0xff]
          %v729 = vld [vmem:[#allocation5 + $0x20] sm:$0xff]
          %v730 = vld [vmem:[#allocation5 + $0x28] sm:$0xff]
          %v731 = vld [vmem:[#allocation5 + $0x30] sm:$0xff]
          %v732 = vld [vmem:[#allocation5 + $0x38] sm:$0xff]
          %v733 = vld [vmem:[#allocation5 + $0x40] sm:$0xff]
          %v734 = vld [vmem:[#allocation5 + $0x48] sm:$0xff]
          %v735 = vld [vmem:[#allocation5 + $0x50] sm:$0xff]
          %v736 = vld [vmem:[#allocation5 + $0x58] sm:$0xff]
          %v737 = vld [vmem:[#allocation5 + $0x60] sm:$0xff]
          %v738 = vld [vmem:[#allocation5 + $0x68] sm:$0xff]
          %v739 = vld [vmem:[#allocation5 + $0x70] sm:$0xff]
          %v740 = vld [vmem:[#allocation5 + $0x78] sm:$0xff]
          %741 = vmatprep.subr.mxu0 0.0
          %742 = vmatpush1.msra.mxu0 %v725
          %743 = vmatprep.subr.mxu0 0.0
          %744 = vmatpush1.msra.mxu0 %v726
          %745 = vmatprep.subr.mxu0 0.0
          %746 = vmatpush1.msra.mxu0 %v727
          %747 = vmatprep.subr.mxu0 0.0
          %748 = vmatpush1.msra.mxu0 %v728
          %749 = vmatprep.subr.mxu0 0.0
          %750 = vmatpush1.msra.mxu0 %v729
          %751 = vmatprep.subr.mxu0 0.0
          %752 = vmatpush1.msra.mxu0 %v730
          %753 = vmatprep.subr.mxu0 0.0
          %754 = vmatpush1.msra.mxu0 %v731
          %755 = vmatprep.subr.mxu0 0.0
          %756 = vmatpush1.msra.mxu0 %v732
          %757 = vmatprep.subr.mxu0 0.0
          %758 = vmatpush1.msra.mxu0 %v733
          %759 = vmatprep.subr.mxu0 0.0
          %760 = vmatpush1.msra.mxu0 %v734
          %761 = vmatprep.subr.mxu0 0.0
          %762 = vmatpush1.msra.mxu0 %v735
          %763 = vmatprep.subr.mxu0 0.0
          %764 = vmatpush1.msra.mxu0 %v736
          %765 = vmatprep.subr.mxu0 0.0
          %766 = vmatpush1.msra.mxu0 %v737
          %767 = vmatprep.subr.mxu0 0.0
          %768 = vmatpush1.msra.mxu0 %v738
          %769 = vmatprep.subr.mxu0 0.0
          %770 = vmatpush1.msra.mxu0 %v739
          %771 = vmatprep.subr.mxu0 0.0
          %772 = vmatpush1.msra.mxu0 %v740
          %773 = vmatprep.subr.mxu0 0.0
          %774 = vmatpush1.msra.mxu0 0.0
          %775 = vmatprep.subr.mxu0 0.0
          %776 = vmatpush1.msra.mxu0 0.0
          %777 = vmatprep.subr.mxu0 0.0
          %778 = vmatpush1.msra.mxu0 0.0
          %779 = vmatprep.subr.mxu0 0.0
          %780 = vmatpush1.msra.mxu0 0.0
          %781 = vmatprep.subr.mxu0 0.0
          %782 = vmatpush1.msra.mxu0 0.0
          %783 = vmatprep.subr.mxu0 0.0
          %784 = vmatpush1.msra.mxu0 0.0
          %785 = vmatprep.subr.mxu0 0.0
          %786 = vmatpush1.msra.mxu0 0.0
          %787 = vmatprep.subr.mxu0 0.0
          %788 = vmatpush1.msra.mxu0 0.0
          %789 = vmatprep.subr.mxu0 0.0
          %790 = vmatpush1.msra.mxu0 0.0
          %791 = vmatprep.subr.mxu0 0.0
          %792 = vmatpush1.msra.mxu0 0.0
          %793 = vmatprep.subr.mxu0 0.0
          %794 = vmatpush1.msra.mxu0 0.0
          %795 = vmatprep.subr.mxu0 0.0
          %796 = vmatpush1.msra.mxu0 0.0
          %797 = vmatprep.subr.mxu0 0.0
          %798 = vmatpush1.msra.mxu0 0.0
          %799 = vmatprep.subr.mxu0 0.0
          %800 = vmatpush1.msra.mxu0 0.0
          %801 = vmatprep.subr.mxu0 0.0
          %802 = vmatpush1.msra.mxu0 0.0
          %803 = vmatprep.subr.mxu0 0.0
          %804 = vmatpush1.msra.mxu0 0.0
          %805 = vmatprep.mubr.f32.mxu0 0.0
          %806 = vmatmul.mubr.f32.gmra.mrb[0].mxu0 %v724
          %v807 = vpop.f32.mrb[0].mxu0
          %v808 = vadd.f32 0.0, %v807
          %v809 = vpop.f32.mrb[0].mxu0
          %810 = vdwg.mxu0
          %811 = vst [vmem:[%s194] sm:$0x3] %v808
        $region44: #{tpu_custom_call.1} parent=27 // pred_fallthru
          _
        %s812 = sand.u32 %s91, 1
        %s813 = scalar_lea.sflag [#allocation4], %s812
        %s814 = sand.u32 %s91, 1
        %s815 = smul.addr %s814, 2
        %s816 = scalar_lea.vmem [#allocation7], %s815
        // Predicated region
        $region45: #{tpu_custom_call.1} parent=27 // pred_check
          %p817 = pneg %p101
        $region46: #{tpu_custom_call.1} parent=27 // pred_check_branch
          %819 = sbr.rel (%p817) target = $region48
        $region47: #{tpu_custom_call.1} parent=27 // pred_region
          %s821 = ssub.s32 32, 32
          %822 = vsyncadd %s813, %s821
          %s823 = smul.addr %s24, 32
          %s824 = scalar_lea.hbm %s2, %s823
          %s826 = sshll.u32 %s816, 4
          %s827 = int_to_ptr.vmem [resolvable:$true] %s826
          %829 = dma.vmem_to_hbm [thread:$0]  %s827, 32, %s824, %s813
        $region48: #{tpu_custom_call.1} parent=27 // pred_fallthru
          _
      $region28: #{tpu_custom_call.1} parent=5 // pred_fallthru
        _
      %p830 = scmp.le.s32.totalorder 2, %s15
      // Predicated region
      $region49: #{tpu_custom_call.1} parent=5 // pred_check
        %p831 = pneg %p830
      $region50: #{tpu_custom_call.1} parent=5 // pred_check_branch
        %833 = sbr.rel (%p831) target = $region52
      $region51: #{tpu_custom_call.1} parent=5 // pred_region
        %s834 = ssub.s32 %s15, 2
        // Predicated region
        $region53: #{tpu_custom_call.1} parent=51 // pred_check
          %p835 = pneg %p107
        $region54: #{tpu_custom_call.1} parent=51 // pred_check_branch
          %837 = sbr.rel (%p835) target = $region56
        $region55: #{tpu_custom_call.1} parent=51 // pred_region
          %s838 = sand.u32 %s92, 1
          %s839 = scalar_lea.sflag [#allocation4], %s838
          %s840 = sand.u32 %s92, 1
          %s841 = smul.addr %s840, 2
          %s842 = scalar_lea.vmem [#allocation7], %s841
          %843 = dma.done %s839, 32
        $region56: #{tpu_custom_call.1} parent=51 // pred_fallthru
          _
      $region52: #{tpu_custom_call.1} parent=5 // pred_fallthru
        _
    $region6: #{tpu_custom_call.1} parent=1 // loop_footer
      %s19 = sadd.s32 1, %s15
    $region7: #{tpu_custom_call.1} parent=1 // loop_footer_branch
      %14 = sbr.rel target = $region3
    $region8: #{tpu_custom_call.1} parent=1 // loop_exit
      _
    %844 = vsyncpa [#allocation3], 1
    %s845 = scalar_lea.sflag [#allocation3], 1
    %846 = vsyncpa %s845, 1
    %847 = vsyncpa [#allocation6], 1
    %848 = vsyncpa [#allocation4], 1
    %s849 = scalar_lea.sflag [#allocation4], 1
    %850 = vsyncpa %s849, 1

</llo_original>
